<compile_context>
chip_gen: v5e
topology: v5e:2x2
jax: 0.10.0
libtpu: 0.0.40
codegen_flags: <defaults>
</compile_context>

<pallas_src>
import functools

import jax
import jax.numpy as jnp
from jax import lax
from jax.experimental import pallas as pl
from jax.experimental.pallas import tpu as pltpu


# Static 3x3 tap offsets, tap index t = dy*3 + dx, offset = (dy-1, dx-1).
_TAPS = tuple((dy - 1, dx - 1) for dy in range(3) for dx in range(3))


def _im2col_into(patch_ref, a, masks, width, hw):
    """Write 9 shifted+masked copies of a (C, HW) tile into (9*C, HW) scratch."""
    c = a.shape[0]
    for t, (oy, ox) in enumerate(_TAPS):
        s = oy * width + ox                      # flat shift for this tap
        if s == 0:
            row = a                              # center tap: no shift, no mask
        else:
            shifted = pltpu.roll(a, (-s) % hw, axis=1)   # XLU lane rotate
            row = shifted * masks[t:t + 1, :]            # zero out-of-bounds halo
        patch_ref[t * c:(t + 1) * c, :] = row


# ----------------------------------------------------------------------------
# Pallas kernel: one grid step == one batch element, fully fused block.
# ----------------------------------------------------------------------------
def basic_block_kernel(
    x_ref,       # (1, Cin, HW)        input image, channels on sublanes
    masks_ref,   # (9, HW)             per-tap border masks (1.0 / 0.0)
    w1_ref,      # (Cout, 9*Cin)       conv1 weights, im2col-packed
    w2_ref,      # (Cout, 9*Cout)      conv2 weights, im2col-packed
    ws_ref,      # (Cout, Cin)         shortcut 1x1 conv weights
    bn_ref,      # (Cout, 6)           [s1 b1 s2 b2 ss bs] folded BN params
    out_ref,     # (1, Cout, HW)
    patch1_ref,  # scratch VMEM (9*Cin,  HW)
    patch2_ref,  # scratch VMEM (9*Cout, HW)
    *,
    width,       # static W (for flat shift amounts)
):
    hw = out_ref.shape[2]

    x = x_ref[0]                 # (Cin, HW)
    masks = masks_ref[...]       # (9, HW)
    bn = bn_ref[...]             # (Cout, 6)

    # ---- conv1 (3x3, pad=1) as one GEMM + bn1 + relu1
    _im2col_into(patch1_ref, x, masks, width, hw)
    h1 = jnp.dot(w1_ref[...], patch1_ref[...],
                 preferred_element_type=jnp.float32)           # (Cout, HW)
    h1 = jnp.maximum(h1 * bn[:, 0:1] + bn[:, 1:2], 0.0)

    # ---- conv2 (3x3, pad=1) as one GEMM + bn2
    _im2col_into(patch2_ref, h1, masks, width, hw)
    h2 = jnp.dot(w2_ref[...], patch2_ref[...],
                 preferred_element_type=jnp.float32)           # (Cout, HW)
    h2 = h2 * bn[:, 2:3] + bn[:, 3:4]

    # ---- shortcut: 1x1 conv + bn on the raw input
    sc = jnp.dot(ws_ref[...], x, preferred_element_type=jnp.float32)
    sc = sc * bn[:, 4:5] + bn[:, 5:6]

    # ---- residual add + relu2 (lane-dense (Cout, HW) store)
    out_ref[0] = jnp.maximum(h2 + sc, 0.0).astype(out_ref.dtype)


# ----------------------------------------------------------------------------
# Wrapper: NCHW in / NCHW out, parameter folding, pallas_call plumbing (glue).
# ----------------------------------------------------------------------------
def _fold_bn(gamma, beta, mean, var, eps=1e-5):
    scale = gamma / jnp.sqrt(var + eps)
    shift = beta - mean * scale
    return scale, shift


@jax.jit
def basic_block_pallas(x_nchw, params):
    N, Cin, H, W = x_nchw.shape
    Cout = params["w1"].shape[-1]
    HW = H * W

    # Free reshape: merge trailing spatial dims (no transpose, no pad).
    x_flat = x_nchw.reshape(N, Cin, HW)

    # Pack weights for the im2col GEMM orientation (Cout, 9*C), row = t*C + c.
    w1 = jnp.transpose(params["w1"].reshape(9, Cin, Cout),
                       (2, 0, 1)).reshape(Cout, 9 * Cin)
    w2 = jnp.transpose(params["w2"].reshape(9, Cout, Cout),
                       (2, 0, 1)).reshape(Cout, 9 * Cout)
    ws = params["ws"].T                                        # (Cout, Cin)

    s1, b1 = _fold_bn(*params["bn1"])
    s2, b2 = _fold_bn(*params["bn2"])
    ss, bs = _fold_bn(*params["bns"])
    bn = jnp.stack([s1, b1, s2, b2, ss, bs], axis=1)           # (Cout, 6)

    # Per-tap halo masks over the flattened spatial axis (constant under jit).
    yy = jnp.arange(H).reshape(H, 1)
    xx = jnp.arange(W).reshape(1, W)
    mask_list = []
    for oy, ox in _TAPS:
        m = ((yy + oy >= 0) & (yy + oy < H) & (xx + ox >= 0) & (xx + ox < W))
        mask_list.append(m.reshape(HW))
    masks = jnp.stack(mask_list, 0).astype(jnp.float32)        # (9, HW)

    full = lambda shape: pl.BlockSpec(shape, lambda n: (0,) * len(shape))

    out = pl.pallas_call(
        functools.partial(basic_block_kernel, width=W),
        out_shape=jax.ShapeDtypeStruct((N, Cout, HW), jnp.float32),
        grid_spec=pltpu.PrefetchScalarGridSpec(
            num_scalar_prefetch=0,
            grid=(N,),
            in_specs=[
                pl.BlockSpec((1, Cin, HW), lambda n: (n, 0, 0)),
                full((9, HW)),
                full((Cout, 9 * Cin)),
                full((Cout, 9 * Cout)),
                full((Cout, Cin)),
                full((Cout, 6)),
            ],
            out_specs=pl.BlockSpec((1, Cout, HW), lambda n: (n, 0, 0)),
            scratch_shapes=[
                pltpu.VMEM((9 * Cin, HW), jnp.float32),
                pltpu.VMEM((9 * Cout, HW), jnp.float32),
            ],
        ),
        compiler_params=pltpu.CompilerParams(
            dimension_semantics=("parallel",)),   # maps batch onto v7x's 2 TCs
    )(x_flat, masks, w1, w2, ws, bn)

    return out.reshape(N, Cout, H, W)             # free reshape back to NCHW


# ----------------------------------------------------------------------------
# Pure-JAX reference for verification.
# ----------------------------------------------------------------------------
def basic_block_ref(x_nchw, params):
    dn = ("NHWC", "HWIO", "NHWC")
    hi = lax.Precision.HIGHEST
    x = jnp.transpose(x_nchw, (0, 2, 3, 1))
    Cin = x.shape[-1]
    Cout = params["w1"].shape[-1]

    s1, b1 = _fold_bn(*params["bn1"])
    s2, b2 = _fold_bn(*params["bn2"])
    ss, bs = _fold_bn(*params["bns"])

    o = lax.conv_general_dilated(x, params["w1"], (1, 1), "SAME",
                                 dimension_numbers=dn, precision=hi)
    o = jnp.maximum(o * s1.reshape(1, 1, 1, -1) + b1.reshape(1, 1, 1, -1), 0.0)
    o = lax.conv_general_dilated(o, params["w2"], (1, 1), "SAME",
                                 dimension_numbers=dn, precision=hi)
    o = o * s2.reshape(1, 1, 1, -1) + b2.reshape(1, 1, 1, -1)
    sc = lax.conv_general_dilated(x, params["ws"].reshape(1, 1, Cin, Cout),
                                  (1, 1), "SAME", dimension_numbers=dn,
                                  precision=hi)
    sc = sc * ss.reshape(1, 1, 1, -1) + bs.reshape(1, 1, 1, -1)
    o = jnp.maximum(o + sc, 0.0)
    return jnp.transpose(o, (0, 3, 1, 2))


# ----------------------------------------------------------------------------
if __name__ == "__main__":
    N, Cin, Cout, H, W = 2, 4, 8, 16, 16  # in_planes=4, planes=8, stride=1

    key = jax.random.PRNGKey(0)
    ks = jax.random.split(key, 16)

    def bn_params(k):
        k0, k1, k2, k3 = jax.random.split(k, 4)
        gamma = jax.random.uniform(k0, (Cout,), jnp.float32, 0.5, 1.5)
        beta = 0.1 * jax.random.normal(k1, (Cout,), jnp.float32)
        mean = 0.1 * jax.random.normal(k2, (Cout,), jnp.float32)
        var = jax.random.uniform(k3, (Cout,), jnp.float32, 0.5, 1.5)
        return (gamma, beta, mean, var)

    params = {
        "w1": 0.2 * jax.random.normal(ks[0], (3, 3, Cin, Cout), jnp.float32),
        "w2": 0.2 * jax.random.normal(ks[1], (3, 3, Cout, Cout), jnp.float32),
        "ws": 0.2 * jax.random.normal(ks[2], (Cin, Cout), jnp.float32),
        "bn1": bn_params(ks[3]),
        "bn2": bn_params(ks[4]),
        "bns": bn_params(ks[5]),
    }

    x = jax.random.normal(ks[6], (N, Cin, H, W), jnp.float32)  # NCHW like PyTorch

    out = basic_block_pallas(x, params)
    out = jax.block_until_ready(out)

    ref = jax.block_until_ready(basic_block_ref(x, params))
    assert out.shape == (N, Cout, H, W), out.shape
    assert jnp.allclose(out, ref, atol=1e-2, rtol=1e-2), (
        float(jnp.max(jnp.abs(out - ref))))

    print("KERNEL_OK")
</pallas_src>

<mosaic_0001>
module attributes {stable_mosaic.version = 11 : i64} {
  func.func @basic_block_kernel(%arg0: i32, %arg1: memref<1x4x256xf32, #tpu.memory_space<vmem>>, %arg2: memref<9x256xf32, #tpu.memory_space<vmem>>, %arg3: memref<8x36xf32, #tpu.memory_space<vmem>>, %arg4: memref<8x72xf32, #tpu.memory_space<vmem>>, %arg5: memref<8x4xf32, #tpu.memory_space<vmem>>, %arg6: memref<8x6xf32, #tpu.memory_space<vmem>>, %arg7: memref<1x8x256xf32, #tpu.memory_space<vmem>>, %arg8: memref<36x256xf32, #tpu.memory_space<vmem>>, %arg9: memref<72x256xf32, #tpu.memory_space<vmem>>) attributes {dimension_semantics = [#tpu.dimension_semantics<parallel>], iteration_bounds = array<i64: 2>, scalar_prefetch = 0 : i64, scratch_operands = 2 : i64, tpu.core_type = #tpu.core_type<tc>, window_params = [{transform_indices = @transform_0, window_bounds = array<i64: 1, 4, 256>}, {pipeline_mode = #tpu.pipeline_mode<synchronous>, transform_indices = @transform_1, window_bounds = array<i64: 9, 256>}, {pipeline_mode = #tpu.pipeline_mode<synchronous>, transform_indices = @transform_2, window_bounds = array<i64: 8, 36>}, {pipeline_mode = #tpu.pipeline_mode<synchronous>, transform_indices = @transform_3, window_bounds = array<i64: 8, 72>}, {pipeline_mode = #tpu.pipeline_mode<synchronous>, transform_indices = @transform_4, window_bounds = array<i64: 8, 4>}, {pipeline_mode = #tpu.pipeline_mode<synchronous>, transform_indices = @transform_5, window_bounds = array<i64: 8, 6>}, {transform_indices = @transform_6, window_bounds = array<i64: 1, 8, 256>}]} {
    %c0 = arith.constant 0 : index
    %c0_0 = arith.constant 0 : index
    %c0_1 = arith.constant 0 : index
    %0 = vector.load %arg1[%c0, %c0_0, %c0_1] : memref<1x4x256xf32, #tpu.memory_space<vmem>>, vector<1x4x256xf32>
    %1 = vector.shape_cast %0 : vector<1x4x256xf32> to vector<4x256xf32>
    %c0_2 = arith.constant 0 : index
    %c0_3 = arith.constant 0 : index
    %2 = vector.load %arg2[%c0_2, %c0_3] : memref<9x256xf32, #tpu.memory_space<vmem>>, vector<9x256xf32>
    %c0_4 = arith.constant 0 : index
    %c0_5 = arith.constant 0 : index
    %3 = vector.load %arg6[%c0_4, %c0_5] : memref<8x6xf32, #tpu.memory_space<vmem>>, vector<8x6xf32>
    %c17_i32 = arith.constant 17 : i32
    %4 = tpu.dynamic_rotate %1 by %c17_i32 dim 1 : vector<4x256xf32>, i32 -> vector<4x256xf32>
    %5 = vector.extract_strided_slice %2 {offsets = [0, 0], sizes = [1, 256], strides = [1, 1]} : vector<9x256xf32> to vector<1x256xf32>
    %6 = vector.broadcast %5 : vector<1x256xf32> to vector<4x256xf32>
    %7 = arith.mulf %4, %6 : vector<4x256xf32>
    %c0_6 = arith.constant 0 : index
    %c0_7 = arith.constant 0 : index
    %8 = vector.load %arg8[%c0_6, %c0_7] : memref<36x256xf32, #tpu.memory_space<vmem>>, vector<4x256xf32>
    tpu.vector_store %arg8[%c0_6, %c0_7], %7 {strides = array<i32>} : memref<36x256xf32, #tpu.memory_space<vmem>>, vector<4x256xf32>,
    %c16_i32 = arith.constant 16 : i32
    %9 = tpu.dynamic_rotate %1 by %c16_i32 dim 1 : vector<4x256xf32>, i32 -> vector<4x256xf32>
    %10 = vector.extract_strided_slice %2 {offsets = [1, 0], sizes = [1, 256], strides = [1, 1]} : vector<9x256xf32> to vector<1x256xf32>
    %11 = vector.broadcast %10 : vector<1x256xf32> to vector<4x256xf32>
    %12 = arith.mulf %9, %11 : vector<4x256xf32>
    %c4 = arith.constant 4 : index
    %c0_8 = arith.constant 0 : index
    %13 = vector.load %arg8[%c4, %c0_8] : memref<36x256xf32, #tpu.memory_space<vmem>>, vector<4x256xf32>
    tpu.vector_store %arg8[%c4, %c0_8], %12 {strides = array<i32>} : memref<36x256xf32, #tpu.memory_space<vmem>>, vector<4x256xf32>,
    %c15_i32 = arith.constant 15 : i32
    %14 = tpu.dynamic_rotate %1 by %c15_i32 dim 1 : vector<4x256xf32>, i32 -> vector<4x256xf32>
    %15 = vector.extract_strided_slice %2 {offsets = [2, 0], sizes = [1, 256], strides = [1, 1]} : vector<9x256xf32> to vector<1x256xf32>
    %16 = vector.broadcast %15 : vector<1x256xf32> to vector<4x256xf32>
    %17 = arith.mulf %14, %16 : vector<4x256xf32>
    %c8 = arith.constant 8 : index
    %c0_9 = arith.constant 0 : index
    %18 = vector.load %arg8[%c8, %c0_9] : memref<36x256xf32, #tpu.memory_space<vmem>>, vector<4x256xf32>
    tpu.vector_store %arg8[%c8, %c0_9], %17 {strides = array<i32>} : memref<36x256xf32, #tpu.memory_space<vmem>>, vector<4x256xf32>,
    %c1_i32 = arith.constant 1 : i32
    %19 = tpu.dynamic_rotate %1 by %c1_i32 dim 1 : vector<4x256xf32>, i32 -> vector<4x256xf32>
    %20 = vector.extract_strided_slice %2 {offsets = [3, 0], sizes = [1, 256], strides = [1, 1]} : vector<9x256xf32> to vector<1x256xf32>
    %21 = vector.broadcast %20 : vector<1x256xf32> to vector<4x256xf32>
    %22 = arith.mulf %19, %21 : vector<4x256xf32>
    %c12 = arith.constant 12 : index
    %c0_10 = arith.constant 0 : index
    %23 = vector.load %arg8[%c12, %c0_10] : memref<36x256xf32, #tpu.memory_space<vmem>>, vector<4x256xf32>
    tpu.vector_store %arg8[%c12, %c0_10], %22 {strides = array<i32>} : memref<36x256xf32, #tpu.memory_space<vmem>>, vector<4x256xf32>,
    %c16 = arith.constant 16 : index
    %c0_11 = arith.constant 0 : index
    %24 = vector.load %arg8[%c16, %c0_11] : memref<36x256xf32, #tpu.memory_space<vmem>>, vector<4x256xf32>
    tpu.vector_store %arg8[%c16, %c0_11], %1 {strides = array<i32>} : memref<36x256xf32, #tpu.memory_space<vmem>>, vector<4x256xf32>,
    %c255_i32 = arith.constant 255 : i32
    %25 = tpu.dynamic_rotate %1 by %c255_i32 dim 1 : vector<4x256xf32>, i32 -> vector<4x256xf32>
    %26 = vector.extract_strided_slice %2 {offsets = [5, 0], sizes = [1, 256], strides = [1, 1]} : vector<9x256xf32> to vector<1x256xf32>
    %27 = vector.broadcast %26 : vector<1x256xf32> to vector<4x256xf32>
    %28 = arith.mulf %25, %27 : vector<4x256xf32>
    %c20 = arith.constant 20 : index
    %c0_12 = arith.constant 0 : index
    %29 = vector.load %arg8[%c20, %c0_12] : memref<36x256xf32, #tpu.memory_space<vmem>>, vector<4x256xf32>
    tpu.vector_store %arg8[%c20, %c0_12], %28 {strides = array<i32>} : memref<36x256xf32, #tpu.memory_space<vmem>>, vector<4x256xf32>,
    %c241_i32 = arith.constant 241 : i32
    %30 = tpu.dynamic_rotate %1 by %c241_i32 dim 1 : vector<4x256xf32>, i32 -> vector<4x256xf32>
    %31 = vector.extract_strided_slice %2 {offsets = [6, 0], sizes = [1, 256], strides = [1, 1]} : vector<9x256xf32> to vector<1x256xf32>
    %32 = vector.broadcast %31 : vector<1x256xf32> to vector<4x256xf32>
    %33 = arith.mulf %30, %32 : vector<4x256xf32>
    %c24 = arith.constant 24 : index
    %c0_13 = arith.constant 0 : index
    %34 = vector.load %arg8[%c24, %c0_13] : memref<36x256xf32, #tpu.memory_space<vmem>>, vector<4x256xf32>
    tpu.vector_store %arg8[%c24, %c0_13], %33 {strides = array<i32>} : memref<36x256xf32, #tpu.memory_space<vmem>>, vector<4x256xf32>,
    %c240_i32 = arith.constant 240 : i32
    %35 = tpu.dynamic_rotate %1 by %c240_i32 dim 1 : vector<4x256xf32>, i32 -> vector<4x256xf32>
    %36 = vector.extract_strided_slice %2 {offsets = [7, 0], sizes = [1, 256], strides = [1, 1]} : vector<9x256xf32> to vector<1x256xf32>
    %37 = vector.broadcast %36 : vector<1x256xf32> to vector<4x256xf32>
    %38 = arith.mulf %35, %37 : vector<4x256xf32>
    %c28 = arith.constant 28 : index
    %c0_14 = arith.constant 0 : index
    %39 = vector.load %arg8[%c28, %c0_14] : memref<36x256xf32, #tpu.memory_space<vmem>>, vector<4x256xf32>
    tpu.vector_store %arg8[%c28, %c0_14], %38 {strides = array<i32>} : memref<36x256xf32, #tpu.memory_space<vmem>>, vector<4x256xf32>,
    %c239_i32 = arith.constant 239 : i32
    %40 = tpu.dynamic_rotate %1 by %c239_i32 dim 1 : vector<4x256xf32>, i32 -> vector<4x256xf32>
    %41 = vector.extract_strided_slice %2 {offsets = [8, 0], sizes = [1, 256], strides = [1, 1]} : vector<9x256xf32> to vector<1x256xf32>
    %42 = vector.broadcast %41 : vector<1x256xf32> to vector<4x256xf32>
    %43 = arith.mulf %40, %42 : vector<4x256xf32>
    %c32 = arith.constant 32 : index
    %c0_15 = arith.constant 0 : index
    %44 = vector.load %arg8[%c32, %c0_15] : memref<36x256xf32, #tpu.memory_space<vmem>>, vector<4x256xf32>
    tpu.vector_store %arg8[%c32, %c0_15], %43 {strides = array<i32>} : memref<36x256xf32, #tpu.memory_space<vmem>>, vector<4x256xf32>,
    %c0_16 = arith.constant 0 : index
    %c0_17 = arith.constant 0 : index
    %45 = vector.load %arg3[%c0_16, %c0_17] : memref<8x36xf32, #tpu.memory_space<vmem>>, vector<8x36xf32>
    %c0_18 = arith.constant 0 : index
    %c0_19 = arith.constant 0 : index
    %46 = vector.load %arg8[%c0_18, %c0_19] : memref<36x256xf32, #tpu.memory_space<vmem>>, vector<36x256xf32>
    %cst = arith.constant dense<0.000000e+00> : vector<8x256xf32>
    %47 = tpu.matmul %45, %46, %cst {dimension_numbers = #tpu.dot_dimension_numbers<[1], [0], [0], [1], [0, 0, 1, 1], [], []>} : vector<8x36xf32>, vector<36x256xf32>, vector<8x256xf32> -> vector<8x256xf32>
    %48 = vector.extract_strided_slice %3 {offsets = [0, 0], sizes = [8, 1], strides = [1, 1]} : vector<8x6xf32> to vector<8x1xf32>
    %49 = vector.broadcast %48 : vector<8x1xf32> to vector<8x256xf32>
    %50 = arith.mulf %47, %49 : vector<8x256xf32>
    %51 = vector.extract_strided_slice %3 {offsets = [0, 1], sizes = [8, 1], strides = [1, 1]} : vector<8x6xf32> to vector<8x1xf32>
    %52 = vector.broadcast %51 : vector<8x1xf32> to vector<8x256xf32>
    %53 = arith.addf %50, %52 : vector<8x256xf32>
    %cst_20 = arith.constant 0.000000e+00 : f32
    %54 = vector.broadcast %cst_20 : f32 to vector<8x256xf32>
    %55 = arith.maximumf %53, %54 : vector<8x256xf32>
    %c17_i32_21 = arith.constant 17 : i32
    %56 = tpu.dynamic_rotate %55 by %c17_i32_21 dim 1 : vector<8x256xf32>, i32 -> vector<8x256xf32>
    %57 = vector.extract_strided_slice %2 {offsets = [0, 0], sizes = [1, 256], strides = [1, 1]} : vector<9x256xf32> to vector<1x256xf32>
    %58 = vector.broadcast %57 : vector<1x256xf32> to vector<8x256xf32>
    %59 = arith.mulf %56, %58 : vector<8x256xf32>
    %c0_22 = arith.constant 0 : index
    %c0_23 = arith.constant 0 : index
    %60 = vector.load %arg9[%c0_22, %c0_23] : memref<72x256xf32, #tpu.memory_space<vmem>>, vector<8x256xf32>
    tpu.vector_store %arg9[%c0_22, %c0_23], %59 {strides = array<i32>} : memref<72x256xf32, #tpu.memory_space<vmem>>, vector<8x256xf32>,
    %c16_i32_24 = arith.constant 16 : i32
    %61 = tpu.dynamic_rotate %55 by %c16_i32_24 dim 1 : vector<8x256xf32>, i32 -> vector<8x256xf32>
    %62 = vector.extract_strided_slice %2 {offsets = [1, 0], sizes = [1, 256], strides = [1, 1]} : vector<9x256xf32> to vector<1x256xf32>
    %63 = vector.broadcast %62 : vector<1x256xf32> to vector<8x256xf32>
    %64 = arith.mulf %61, %63 : vector<8x256xf32>
    %c8_25 = arith.constant 8 : index
    %c0_26 = arith.constant 0 : index
    %65 = vector.load %arg9[%c8_25, %c0_26] : memref<72x256xf32, #tpu.memory_space<vmem>>, vector<8x256xf32>
    tpu.vector_store %arg9[%c8_25, %c0_26], %64 {strides = array<i32>} : memref<72x256xf32, #tpu.memory_space<vmem>>, vector<8x256xf32>,
    %c15_i32_27 = arith.constant 15 : i32
    %66 = tpu.dynamic_rotate %55 by %c15_i32_27 dim 1 : vector<8x256xf32>, i32 -> vector<8x256xf32>
    %67 = vector.extract_strided_slice %2 {offsets = [2, 0], sizes = [1, 256], strides = [1, 1]} : vector<9x256xf32> to vector<1x256xf32>
    %68 = vector.broadcast %67 : vector<1x256xf32> to vector<8x256xf32>
    %69 = arith.mulf %66, %68 : vector<8x256xf32>
    %c16_28 = arith.constant 16 : index
    %c0_29 = arith.constant 0 : index
    %70 = vector.load %arg9[%c16_28, %c0_29] : memref<72x256xf32, #tpu.memory_space<vmem>>, vector<8x256xf32>
    tpu.vector_store %arg9[%c16_28, %c0_29], %69 {strides = array<i32>} : memref<72x256xf32, #tpu.memory_space<vmem>>, vector<8x256xf32>,
    %c1_i32_30 = arith.constant 1 : i32
    %71 = tpu.dynamic_rotate %55 by %c1_i32_30 dim 1 : vector<8x256xf32>, i32 -> vector<8x256xf32>
    %72 = vector.extract_strided_slice %2 {offsets = [3, 0], sizes = [1, 256], strides = [1, 1]} : vector<9x256xf32> to vector<1x256xf32>
    %73 = vector.broadcast %72 : vector<1x256xf32> to vector<8x256xf32>
    %74 = arith.mulf %71, %73 : vector<8x256xf32>
    %c24_31 = arith.constant 24 : index
    %c0_32 = arith.constant 0 : index
    %75 = vector.load %arg9[%c24_31, %c0_32] : memref<72x256xf32, #tpu.memory_space<vmem>>, vector<8x256xf32>
    tpu.vector_store %arg9[%c24_31, %c0_32], %74 {strides = array<i32>} : memref<72x256xf32, #tpu.memory_space<vmem>>, vector<8x256xf32>,
    %c32_33 = arith.constant 32 : index
    %c0_34 = arith.constant 0 : index
    %76 = vector.load %arg9[%c32_33, %c0_34] : memref<72x256xf32, #tpu.memory_space<vmem>>, vector<8x256xf32>
    tpu.vector_store %arg9[%c32_33, %c0_34], %55 {strides = array<i32>} : memref<72x256xf32, #tpu.memory_space<vmem>>, vector<8x256xf32>,
    %c255_i32_35 = arith.constant 255 : i32
    %77 = tpu.dynamic_rotate %55 by %c255_i32_35 dim 1 : vector<8x256xf32>, i32 -> vector<8x256xf32>
    %78 = vector.extract_strided_slice %2 {offsets = [5, 0], sizes = [1, 256], strides = [1, 1]} : vector<9x256xf32> to vector<1x256xf32>
    %79 = vector.broadcast %78 : vector<1x256xf32> to vector<8x256xf32>
    %80 = arith.mulf %77, %79 : vector<8x256xf32>
    %c40 = arith.constant 40 : index
    %c0_36 = arith.constant 0 : index
    %81 = vector.load %arg9[%c40, %c0_36] : memref<72x256xf32, #tpu.memory_space<vmem>>, vector<8x256xf32>
    tpu.vector_store %arg9[%c40, %c0_36], %80 {strides = array<i32>} : memref<72x256xf32, #tpu.memory_space<vmem>>, vector<8x256xf32>,
    %c241_i32_37 = arith.constant 241 : i32
    %82 = tpu.dynamic_rotate %55 by %c241_i32_37 dim 1 : vector<8x256xf32>, i32 -> vector<8x256xf32>
    %83 = vector.extract_strided_slice %2 {offsets = [6, 0], sizes = [1, 256], strides = [1, 1]} : vector<9x256xf32> to vector<1x256xf32>
    %84 = vector.broadcast %83 : vector<1x256xf32> to vector<8x256xf32>
    %85 = arith.mulf %82, %84 : vector<8x256xf32>
    %c48 = arith.constant 48 : index
    %c0_38 = arith.constant 0 : index
    %86 = vector.load %arg9[%c48, %c0_38] : memref<72x256xf32, #tpu.memory_space<vmem>>, vector<8x256xf32>
    tpu.vector_store %arg9[%c48, %c0_38], %85 {strides = array<i32>} : memref<72x256xf32, #tpu.memory_space<vmem>>, vector<8x256xf32>,
    %c240_i32_39 = arith.constant 240 : i32
    %87 = tpu.dynamic_rotate %55 by %c240_i32_39 dim 1 : vector<8x256xf32>, i32 -> vector<8x256xf32>
    %88 = vector.extract_strided_slice %2 {offsets = [7, 0], sizes = [1, 256], strides = [1, 1]} : vector<9x256xf32> to vector<1x256xf32>
    %89 = vector.broadcast %88 : vector<1x256xf32> to vector<8x256xf32>
    %90 = arith.mulf %87, %89 : vector<8x256xf32>
    %c56 = arith.constant 56 : index
    %c0_40 = arith.constant 0 : index
    %91 = vector.load %arg9[%c56, %c0_40] : memref<72x256xf32, #tpu.memory_space<vmem>>, vector<8x256xf32>
    tpu.vector_store %arg9[%c56, %c0_40], %90 {strides = array<i32>} : memref<72x256xf32, #tpu.memory_space<vmem>>, vector<8x256xf32>,
    %c239_i32_41 = arith.constant 239 : i32
    %92 = tpu.dynamic_rotate %55 by %c239_i32_41 dim 1 : vector<8x256xf32>, i32 -> vector<8x256xf32>
    %93 = vector.extract_strided_slice %2 {offsets = [8, 0], sizes = [1, 256], strides = [1, 1]} : vector<9x256xf32> to vector<1x256xf32>
    %94 = vector.broadcast %93 : vector<1x256xf32> to vector<8x256xf32>
    %95 = arith.mulf %92, %94 : vector<8x256xf32>
    %c64 = arith.constant 64 : index
    %c0_42 = arith.constant 0 : index
    %96 = vector.load %arg9[%c64, %c0_42] : memref<72x256xf32, #tpu.memory_space<vmem>>, vector<8x256xf32>
    tpu.vector_store %arg9[%c64, %c0_42], %95 {strides = array<i32>} : memref<72x256xf32, #tpu.memory_space<vmem>>, vector<8x256xf32>,
    %c0_43 = arith.constant 0 : index
    %c0_44 = arith.constant 0 : index
    %97 = vector.load %arg4[%c0_43, %c0_44] : memref<8x72xf32, #tpu.memory_space<vmem>>, vector<8x72xf32>
    %c0_45 = arith.constant 0 : index
    %c0_46 = arith.constant 0 : index
    %98 = vector.load %arg9[%c0_45, %c0_46] : memref<72x256xf32, #tpu.memory_space<vmem>>, vector<72x256xf32>
    %cst_47 = arith.constant dense<0.000000e+00> : vector<8x256xf32>
    %99 = tpu.matmul %97, %98, %cst_47 {dimension_numbers = #tpu.dot_dimension_numbers<[1], [0], [0], [1], [0, 0, 1, 1], [], []>} : vector<8x72xf32>, vector<72x256xf32>, vector<8x256xf32> -> vector<8x256xf32>
    %100 = vector.extract_strided_slice %3 {offsets = [0, 2], sizes = [8, 1], strides = [1, 1]} : vector<8x6xf32> to vector<8x1xf32>
    %101 = vector.broadcast %100 : vector<8x1xf32> to vector<8x256xf32>
    %102 = arith.mulf %99, %101 : vector<8x256xf32>
    %103 = vector.extract_strided_slice %3 {offsets = [0, 3], sizes = [8, 1], strides = [1, 1]} : vector<8x6xf32> to vector<8x1xf32>
    %104 = vector.broadcast %103 : vector<8x1xf32> to vector<8x256xf32>
    %105 = arith.addf %102, %104 : vector<8x256xf32>
    %c0_48 = arith.constant 0 : index
    %c0_49 = arith.constant 0 : index
    %106 = vector.load %arg5[%c0_48, %c0_49] : memref<8x4xf32, #tpu.memory_space<vmem>>, vector<8x4xf32>
    %cst_50 = arith.constant dense<0.000000e+00> : vector<8x256xf32>
    %107 = tpu.matmul %106, %1, %cst_50 {dimension_numbers = #tpu.dot_dimension_numbers<[1], [0], [0], [1], [0, 0, 1, 1], [], []>} : vector<8x4xf32>, vector<4x256xf32>, vector<8x256xf32> -> vector<8x256xf32>
    %108 = vector.extract_strided_slice %3 {offsets = [0, 4], sizes = [8, 1], strides = [1, 1]} : vector<8x6xf32> to vector<8x1xf32>
    %109 = vector.broadcast %108 : vector<8x1xf32> to vector<8x256xf32>
    %110 = arith.mulf %107, %109 : vector<8x256xf32>
    %111 = vector.extract_strided_slice %3 {offsets = [0, 5], sizes = [8, 1], strides = [1, 1]} : vector<8x6xf32> to vector<8x1xf32>
    %112 = vector.broadcast %111 : vector<8x1xf32> to vector<8x256xf32>
    %113 = arith.addf %110, %112 : vector<8x256xf32>
    %114 = arith.addf %105, %113 : vector<8x256xf32>
    %cst_51 = arith.constant 0.000000e+00 : f32
    %115 = vector.broadcast %cst_51 : f32 to vector<8x256xf32>
    %116 = arith.maximumf %114, %115 : vector<8x256xf32>
    %c0_52 = arith.constant 0 : index
    %c0_53 = arith.constant 0 : index
    %c0_54 = arith.constant 0 : index
    %117 = vector.load %arg7[%c0_52, %c0_53, %c0_54] : memref<1x8x256xf32, #tpu.memory_space<vmem>>, vector<1x8x256xf32>
    %118 = vector.shape_cast %117 : vector<1x8x256xf32> to vector<8x256xf32>
    %119 = vector.shape_cast %116 : vector<8x256xf32> to vector<1x8x256xf32>
    tpu.vector_store %arg7[%c0_52, %c0_53, %c0_54], %119 {strides = array<i32>} : memref<1x8x256xf32, #tpu.memory_space<vmem>>, vector<1x8x256xf32>,
    return
  }
  func.func @transform_0(%arg0: i32) -> (i32, i32, i32) {
    %c0_i32 = arith.constant 0 : i32
    %c0_i32_0 = arith.constant 0 : i32
    %c0_i32_1 = arith.constant 0 : i32
    return %arg0, %c0_i32, %c0_i32_0 : i32, i32, i32
  }
  func.func @transform_1(%arg0: i32) -> (i32, i32) {
    %c0_i32 = arith.constant 0 : i32
    %c0_i32_0 = arith.constant 0 : i32
    %c0_i32_1 = arith.constant 0 : i32
    return %c0_i32, %c0_i32_0 : i32, i32
  }
  func.func @transform_2(%arg0: i32) -> (i32, i32) {
    %c0_i32 = arith.constant 0 : i32
    %c0_i32_0 = arith.constant 0 : i32
    %c0_i32_1 = arith.constant 0 : i32
    return %c0_i32, %c0_i32_0 : i32, i32
  }
  func.func @transform_3(%arg0: i32) -> (i32, i32) {
    %c0_i32 = arith.constant 0 : i32
    %c0_i32_0 = arith.constant 0 : i32
    %c0_i32_1 = arith.constant 0 : i32
    return %c0_i32, %c0_i32_0 : i32, i32
  }
  func.func @transform_4(%arg0: i32) -> (i32, i32) {
    %c0_i32 = arith.constant 0 : i32
    %c0_i32_0 = arith.constant 0 : i32
    %c0_i32_1 = arith.constant 0 : i32
    return %c0_i32, %c0_i32_0 : i32, i32
  }
  func.func @transform_5(%arg0: i32) -> (i32, i32) {
    %c0_i32 = arith.constant 0 : i32
    %c0_i32_0 = arith.constant 0 : i32
    %c0_i32_1 = arith.constant 0 : i32
    return %c0_i32, %c0_i32_0 : i32, i32
  }
  func.func @transform_6(%arg0: i32) -> (i32, i32, i32) {
    %c0_i32 = arith.constant 0 : i32
    %c0_i32_0 = arith.constant 0 : i32
    %c0_i32_1 = arith.constant 0 : i32
    return %arg0, %c0_i32, %c0_i32_0 : i32, i32, i32
  }
}

</mosaic_0001>

<llo_original>
// kernel: basic_block_pallas.1
$region0: #{basic_block_pallas.1}
  #allocation0 [shape = 'u32[]', space=smem, size = 0x4, offset = 0x4, fixed_abs, tag = 'smem constant byte address 0x4 - core index']
  #allocation1 [shape = 'u32[72,128]{1,0:T(1,128)}', space=vmem, size = 0x9000, scoped, tag = 'internal scratch']
  #allocation2 [shape = 'f32[36,256]{1,0:T(8,128)}', space=vmem, size = 0xa000, scoped, tag = 'scratch operand']
  #allocation3 [shape = 'f32[72,256]{1,0:T(8,128)}', space=vmem, size = 0x12000, scoped, tag = 'scratch operand']
  %s0 = inlined_call_operand.vmem [shape: f32[2,4,256], index: 0, kind: input, shape index: {}]
  %s1 = inlined_call_operand.vmem [shape: f32[9,256], index: 1, kind: input, shape index: {}]
  %s2 = inlined_call_operand.vmem [shape: f32[8,36], index: 2, kind: input, shape index: {}]
  %s3 = inlined_call_operand.vmem [shape: f32[8,72], index: 3, kind: input, shape index: {}]
  %s4 = inlined_call_operand.vmem [shape: f32[8,4], index: 4, kind: input, shape index: {}]
  %s5 = inlined_call_operand.vmem [shape: f32[8,6], index: 5, kind: input, shape index: {}]
  %s6 = inlined_call_operand.vmem [shape: f32[2,8,256], index: 6, kind: output, shape index: {}]
  %s7 = sld [smem:[#allocation0]]
  $region57: #{basic_block_pallas.1} parent=0
    _
  %s9 = ssub.s32 1, %s7
  %s10 = scalar_select 0, %s9, %s7
  loop: start=0, step=1, limit=4
  $region2: #{basic_block_pallas.1} parent=0 // loop_pre_header
    _
  $region3: #{basic_block_pallas.1} parent=0 // loop_header
    %s12 = sphi 0, %s16
    %p13 = scmp.ge.s32.totalorder %s12, 4
    %s22 = sphi 0, %s24
    %s25 = sphi 0, %s22
    %s26 = sphi 0, %s25
    %s42 = sphi 0, %s26
    %s46 = sphi 0, %s46
    %s48 = sphi 0, %s46
    %s49 = sphi 0, %s48
    %s63 = sphi 0, %s49
    %s67 = sphi 0, %s67
    %s69 = sphi 0, %s67
    %s70 = sphi 0, %s69
    %s84 = sphi 0, %s70
    %s88 = sphi 0, %s88
    %s90 = sphi 0, %s88
    %s91 = sphi 0, %s90
    %s105 = sphi 0, %s91
    %s109 = sphi 0, %s109
    %s111 = sphi 0, %s109
    %s112 = sphi 0, %s111
    %s126 = sphi 0, %s112
    %s130 = sphi 0, %s130
    %s132 = sphi 0, %s130
    %s133 = sphi 0, %s132
    %s147 = sphi 0, %s133
    %s153 = sphi 0, %s155
    %s156 = sphi 0, %s153
    %s157 = sphi 0, %s156
    %s173 = sphi 0, %s157
  $region4: #{basic_block_pallas.1} parent=0 // loop_header_branch
    %15 = sbr.rel (%p13) target = $region8
  $region5: #{basic_block_pallas.1} parent=0 // loop_body
    %s17 = ssub.s32 %s12, 1
    %s18 = ssub.s32 %s12, 2
    %s19 = sadd.s32 %s12, 1
    %s20 = ssub.s32 %s12, %s19
    %p21 = scmp.eq.s32.totalorder %s20, 0
    %s23 = sadd.s32 %s22, 1
    %s24 = scalar_select %p21, %s22, %s23
    %p27 = pneg %p21
    %p28 = scmp.eq.s32.totalorder %s12, 1
    %p29 = por %p27, %p28
    %p30 = scmp.ne.s32.totalorder %s22, %s25
    %p31 = scmp.eq.s32.totalorder %s12, 0
    %p32 = por %p30, %p31
    %p33 = scmp.ne.s32.totalorder %s22, %s25
    %p34 = scmp.eq.s32.totalorder %s17, 1
    %p35 = por %p33, %p34
    %p36 = scmp.ne.s32.totalorder %s25, %s26
    %p37 = scmp.eq.s32.totalorder %s17, 0
    %p38 = por %p36, %p37
    %p39 = scmp.ne.s32.totalorder %s25, %s26
    %p40 = scmp.eq.s32.totalorder %s18, 1
    %p41 = por %p39, %p40
    %p43 = scmp.ne.s32.totalorder %s26, %s42
    %p44 = scmp.eq.s32.totalorder %s18, 0
    %p45 = por %p43, %p44
    %s47 = sadd.s32 %s46, 1
    %p50 = scmp.eq.s32.totalorder %s12, 1
    %p51 = scmp.ne.s32.totalorder %s46, %s48
    %p52 = scmp.eq.s32.totalorder %s12, 0
    %p53 = por %p51, %p52
    %p54 = scmp.ne.s32.totalorder %s46, %s48
    %p55 = scmp.eq.s32.totalorder %s17, 1
    %p56 = por %p54, %p55
    %p57 = scmp.ne.s32.totalorder %s48, %s49
    %p58 = scmp.eq.s32.totalorder %s17, 0
    %p59 = por %p57, %p58
    %p60 = scmp.ne.s32.totalorder %s48, %s49
    %p61 = scmp.eq.s32.totalorder %s18, 1
    %p62 = por %p60, %p61
    %p64 = scmp.ne.s32.totalorder %s49, %s63
    %p65 = scmp.eq.s32.totalorder %s18, 0
    %p66 = por %p64, %p65
    %s68 = sadd.s32 %s67, 1
    %p71 = scmp.eq.s32.totalorder %s12, 1
    %p72 = scmp.ne.s32.totalorder %s67, %s69
    %p73 = scmp.eq.s32.totalorder %s12, 0
    %p74 = por %p72, %p73
    %p75 = scmp.ne.s32.totalorder %s67, %s69
    %p76 = scmp.eq.s32.totalorder %s17, 1
    %p77 = por %p75, %p76
    %p78 = scmp.ne.s32.totalorder %s69, %s70
    %p79 = scmp.eq.s32.totalorder %s17, 0
    %p80 = por %p78, %p79
    %p81 = scmp.ne.s32.totalorder %s69, %s70
    %p82 = scmp.eq.s32.totalorder %s18, 1
    %p83 = por %p81, %p82
    %p85 = scmp.ne.s32.totalorder %s70, %s84
    %p86 = scmp.eq.s32.totalorder %s18, 0
    %p87 = por %p85, %p86
    %s89 = sadd.s32 %s88, 1
    %p92 = scmp.eq.s32.totalorder %s12, 1
    %p93 = scmp.ne.s32.totalorder %s88, %s90
    %p94 = scmp.eq.s32.totalorder %s12, 0
    %p95 = por %p93, %p94
    %p96 = scmp.ne.s32.totalorder %s88, %s90
    %p97 = scmp.eq.s32.totalorder %s17, 1
    %p98 = por %p96, %p97
    %p99 = scmp.ne.s32.totalorder %s90, %s91
    %p100 = scmp.eq.s32.totalorder %s17, 0
    %p101 = por %p99, %p100
    %p102 = scmp.ne.s32.totalorder %s90, %s91
    %p103 = scmp.eq.s32.totalorder %s18, 1
    %p104 = por %p102, %p103
    %p106 = scmp.ne.s32.totalorder %s91, %s105
    %p107 = scmp.eq.s32.totalorder %s18, 0
    %p108 = por %p106, %p107
    %s110 = sadd.s32 %s109, 1
    %p113 = scmp.eq.s32.totalorder %s12, 1
    %p114 = scmp.ne.s32.totalorder %s109, %s111
    %p115 = scmp.eq.s32.totalorder %s12, 0
    %p116 = por %p114, %p115
    %p117 = scmp.ne.s32.totalorder %s109, %s111
    %p118 = scmp.eq.s32.totalorder %s17, 1
    %p119 = por %p117, %p118
    %p120 = scmp.ne.s32.totalorder %s111, %s112
    %p121 = scmp.eq.s32.totalorder %s17, 0
    %p122 = por %p120, %p121
    %p123 = scmp.ne.s32.totalorder %s111, %s112
    %p124 = scmp.eq.s32.totalorder %s18, 1
    %p125 = por %p123, %p124
    %p127 = scmp.ne.s32.totalorder %s112, %s126
    %p128 = scmp.eq.s32.totalorder %s18, 0
    %p129 = por %p127, %p128
    %s131 = sadd.s32 %s130, 1
    %p134 = scmp.eq.s32.totalorder %s12, 1
    %p135 = scmp.ne.s32.totalorder %s130, %s132
    %p136 = scmp.eq.s32.totalorder %s12, 0
    %p137 = por %p135, %p136
    %p138 = scmp.ne.s32.totalorder %s130, %s132
    %p139 = scmp.eq.s32.totalorder %s17, 1
    %p140 = por %p138, %p139
    %p141 = scmp.ne.s32.totalorder %s132, %s133
    %p142 = scmp.eq.s32.totalorder %s17, 0
    %p143 = por %p141, %p142
    %p144 = scmp.ne.s32.totalorder %s132, %s133
    %p145 = scmp.eq.s32.totalorder %s18, 1
    %p146 = por %p144, %p145
    %p148 = scmp.ne.s32.totalorder %s133, %s147
    %p149 = scmp.eq.s32.totalorder %s18, 0
    %p150 = por %p148, %p149
    %s151 = ssub.s32 %s12, %s19
    %p152 = scmp.eq.s32.totalorder %s151, 0
    %s154 = sadd.s32 %s153, 1
    %s155 = scalar_select %p152, %s153, %s154
    %p158 = pneg %p152
    %p159 = scmp.eq.s32.totalorder %s12, 1
    %p160 = por %p158, %p159
    %p161 = scmp.ne.s32.totalorder %s153, %s156
    %p162 = scmp.eq.s32.totalorder %s12, 0
    %p163 = por %p161, %p162
    %p164 = scmp.ne.s32.totalorder %s153, %s156
    %p165 = scmp.eq.s32.totalorder %s17, 1
    %p166 = por %p164, %p165
    %p167 = scmp.ne.s32.totalorder %s156, %s157
    %p168 = scmp.eq.s32.totalorder %s17, 0
    %p169 = por %p167, %p168
    %p170 = scmp.ne.s32.totalorder %s156, %s157
    %p171 = scmp.eq.s32.totalorder %s18, 1
    %p172 = por %p170, %p171
    %p174 = scmp.ne.s32.totalorder %s157, %s173
    %p175 = scmp.eq.s32.totalorder %s18, 0
    %p176 = por %p174, %p175
    %p177 = scmp.le.s32.totalorder 1, %s12
    %p178 = scmp.lt.s32.totalorder %s12, 3
    %p179 = pnand %p177, %p178
    %p180 = pneg %p179
    // Predicated region
    $region9: #{basic_block_pallas.1} parent=5 // pred_check
      _
    $region10: #{basic_block_pallas.1} parent=5 // pred_check_branch
      %182 = sbr.rel (%p179) target = $region12
    $region11: #{basic_block_pallas.1} parent=5 // pred_region
      %s183 = ssub.s32 %s12, 1
      // Predicated region
      $region13: #{basic_block_pallas.1} parent=11 // pred_check
        %p184 = pneg %p59
      $region14: #{basic_block_pallas.1} parent=11 // pred_check_branch
        %186 = sbr.rel (%p184) target = $region16
      $region15: #{basic_block_pallas.1} parent=11 // pred_region
        _
      $region16: #{basic_block_pallas.1} parent=11 // pred_fallthru
        _
      // Predicated region
      $region17: #{basic_block_pallas.1} parent=11 // pred_check
        %p187 = pneg %p80
      $region18: #{basic_block_pallas.1} parent=11 // pred_check_branch
        %189 = sbr.rel (%p187) target = $region20
      $region19: #{basic_block_pallas.1} parent=11 // pred_region
        _
      $region20: #{basic_block_pallas.1} parent=11 // pred_fallthru
        _
      // Predicated region
      $region21: #{basic_block_pallas.1} parent=11 // pred_check
        %p190 = pneg %p101
      $region22: #{basic_block_pallas.1} parent=11 // pred_check_branch
        %192 = sbr.rel (%p190) target = $region24
      $region23: #{basic_block_pallas.1} parent=11 // pred_region
        _
      $region24: #{basic_block_pallas.1} parent=11 // pred_fallthru
        _
      // Predicated region
      $region25: #{basic_block_pallas.1} parent=11 // pred_check
        %p193 = pneg %p122
      $region26: #{basic_block_pallas.1} parent=11 // pred_check_branch
        %195 = sbr.rel (%p193) target = $region28
      $region27: #{basic_block_pallas.1} parent=11 // pred_region
        _
      $region28: #{basic_block_pallas.1} parent=11 // pred_fallthru
        _
      // Predicated region
      $region29: #{basic_block_pallas.1} parent=11 // pred_check
        %p196 = pneg %p143
      $region30: #{basic_block_pallas.1} parent=11 // pred_check_branch
        %198 = sbr.rel (%p196) target = $region32
      $region31: #{basic_block_pallas.1} parent=11 // pred_region
        _
      $region32: #{basic_block_pallas.1} parent=11 // pred_fallthru
        _
    $region12: #{basic_block_pallas.1} parent=5 // pred_fallthru
      _
    %p199 = scmp.lt.s32.totalorder %s12, 2
    // Predicated region
    $region33: #{basic_block_pallas.1} parent=5 // pred_check
      %p200 = pneg %p199
    $region34: #{basic_block_pallas.1} parent=5 // pred_check_branch
      %202 = sbr.rel (%p200) target = $region36
    $region35: #{basic_block_pallas.1} parent=5 // pred_region
      // Predicated region
      $region37: #{basic_block_pallas.1} parent=35 // pred_check
        %p203 = pneg %p32
      $region38: #{basic_block_pallas.1} parent=35 // pred_check_branch
        %205 = sbr.rel (%p203) target = $region40
      $region39: #{basic_block_pallas.1} parent=35 // pred_region
        %p206 = scmp.lt.s32.totalorder %s12, 1
        %s207 = scalar_select %p206, %s12, 1
        %s208 = smul.addr %s207, 2
        %s209 = smul.addr %s208, 4
        %s210 = scalar_lea.vmem %s0, %s209
      $region40: #{basic_block_pallas.1} parent=35 // pred_fallthru
        _
    $region36: #{basic_block_pallas.1} parent=5 // pred_fallthru
      _
    %p211 = scmp.le.s32.totalorder 1, %s12
    %p212 = scmp.lt.s32.totalorder %s12, 3
    %p213 = pnand %p211, %p212
    %p214 = pneg %p213
    // Predicated region
    $region41: #{basic_block_pallas.1} parent=5 // pred_check
      _
    $region42: #{basic_block_pallas.1} parent=5 // pred_check_branch
      %216 = sbr.rel (%p213) target = $region44
    $region43: #{basic_block_pallas.1} parent=5 // pred_region
      %s217 = ssub.s32 %s12, 1
      %p218 = scmp.lt.s32.totalorder %s17, 1
      %s219 = scalar_select %p218, %s17, 1
      %s220 = smul.addr %s219, 2
      %s221 = smul.addr %s220, 4
      %s222 = scalar_lea.vmem %s0, %s221
      %p223 = pneg %p38
      %p224 = pneg %p35
      %p225 = pneg %p59
      %p226 = pneg %p56
      %p227 = pneg %p80
      %p228 = pneg %p77
      %p229 = pneg %p101
      %p230 = pneg %p98
      %p231 = pneg %p122
      %p232 = pneg %p119
      %p233 = pneg %p143
      %p234 = pneg %p140
      %p235 = pneg %p169
      %p236 = pneg %p166
      %p237 = scmp.lt.s32.totalorder %s17, 1
      %s238 = scalar_select %p237, %s17, 1
      %s239 = smul.addr %s238, 2
      %s240 = smul.addr %s239, 8
      %s241 = scalar_lea.vmem %s6, %s240
      %p242 = scmp.lt.s32.totalorder %s17, 1
      %s243 = scalar_select %p242, %s17, 1
      %s244 = smul.addr %s243, 2
      %s245 = smul.addr %s244, 4
      %s246 = scalar_lea.vmem %s0, %s245
      %p247 = scmp.lt.s32.totalorder %s17, 1
      %s248 = scalar_select %p247, %s17, 1
      %s249 = smul.addr %s248, 2
      %s250 = smul.addr %s249, 8
      %s251 = scalar_lea.vmem %s6, %s250
      %v252 = vld [vmem:[%s246] sm:$0xff]
      %v253 = vld [vmem:[%s1] sm:$0xff]
      %v254 = vld [vmem:[%s1 + $0x8] sm:$0xff]
      %v255 = vld [vmem:[%s1 + $0x10] sm:$0x1]
      %v256 = vld [vmem:[%s1 + $0x18] sm:$0x1]
      %v257 = vld [vmem:[%s5] sm:$0xff]
      %259 = vst [vmem:[#allocation1] ss:$2 sm:$0xff] %v252
      %v260 = vld.sshfl [vmem:[#allocation1] sm:$0xff pattern:$0x75316420]
      %v261 = vld.sshfl [vmem:[#allocation1 + $0x8] sm:$0xff pattern:$0x75316420]
      %264 = vrot.lane.b32.xlu0 %v260, 17
      %v265 = vpop.permute.xlu0 %264
      %266 = vrot.lane.b32.xlu0 %v261, 17
      %v267 = vpop.permute.xlu0 %266
      %v268 = vlaneseq
      %v269 = vand.u32 %v268, 127
      %vm270 = vcmp.lt.s32.totalorder %v269, 17
      %v271 = vsel %vm270, %v265, %v267
      %v272 = vsel %vm270, %v267, %v265
      %v273 = vperm.slane %v253, 0
      %v274 = vperm.slane %v254, 0
      %v275 = vmul.f32 %v272, %v273
      %v276 = vmul.f32 %v271, %v274
      %277 = vst [vmem:[#allocation2] sm:$0xf] %v275
      %278 = vst [vmem:[#allocation2 + $0x8] sm:$0xf] %v276
      %279 = vst [vmem:[#allocation1] ss:$2 sm:$0xff] %v252
      %v280 = vld.sshfl [vmem:[#allocation1] sm:$0xff pattern:$0x75316420]
      %v281 = vld.sshfl [vmem:[#allocation1 + $0x8] sm:$0xff pattern:$0x75316420]
      %284 = vrot.lane.b32.xlu0 %v280, 16
      %v285 = vpop.permute.xlu0 %284
      %286 = vrot.lane.b32.xlu0 %v281, 16
      %v287 = vpop.permute.xlu0 %286
      %vm288 = vcmp.lt.s32.totalorder %v269, 16
      %v289 = vsel %vm288, %v285, %v287
      %v290 = vsel %vm288, %v287, %v285
      %v291 = vperm.slane %v253, 1
      %v292 = vperm.slane %v254, 1
      %v293 = vmul.f32 %v290, %v291
      %v294 = vmul.f32 %v289, %v292
      %v297 = vrot.slane %v293, 4
      %v298 = vrot.slane %v294, 4
      %301 = vst [vmem:[#allocation2] sm:$0xf0] %v297
      %302 = vst [vmem:[#allocation2 + $0x8] sm:$0xf0] %v298
      %303 = vst [vmem:[#allocation1] ss:$2 sm:$0xff] %v252
      %v304 = vld.sshfl [vmem:[#allocation1] sm:$0xff pattern:$0x75316420]
      %v305 = vld.sshfl [vmem:[#allocation1 + $0x8] sm:$0xff pattern:$0x75316420]
      %308 = vrot.lane.b32.xlu0 %v304, 15
      %v309 = vpop.permute.xlu0 %308
      %310 = vrot.lane.b32.xlu0 %v305, 15
      %v311 = vpop.permute.xlu0 %310
      %vm312 = vcmp.lt.s32.totalorder %v269, 15
      %v313 = vsel %vm312, %v309, %v311
      %v314 = vsel %vm312, %v311, %v309
      %v315 = vperm.slane %v253, 2
      %v316 = vperm.slane %v254, 2
      %v317 = vmul.f32 %v314, %v315
      %v318 = vmul.f32 %v313, %v316
      %319 = vst [vmem:[#allocation2 + $0x10] sm:$0xf] %v317
      %320 = vst [vmem:[#allocation2 + $0x18] sm:$0xf] %v318
      %321 = vst [vmem:[#allocation1] ss:$2 sm:$0xff] %v252
      %v322 = vld.sshfl [vmem:[#allocation1] sm:$0xff pattern:$0x75316420]
      %v323 = vld.sshfl [vmem:[#allocation1 + $0x8] sm:$0xff pattern:$0x75316420]
      %326 = vrot.lane.b32.xlu0 %v322, 1
      %v327 = vpop.permute.xlu0 %326
      %328 = vrot.lane.b32.xlu0 %v323, 1
      %v329 = vpop.permute.xlu0 %328
      %vm330 = vcmp.lt.s32.totalorder %v269, 1
      %v331 = vsel %vm330, %v327, %v329
      %v332 = vsel %vm330, %v329, %v327
      %v333 = vperm.slane %v253, 3
      %v334 = vperm.slane %v254, 3
      %v335 = vmul.f32 %v332, %v333
      %v336 = vmul.f32 %v331, %v334
      %v339 = vrot.slane %v335, 4
      %v340 = vrot.slane %v336, 4
      %343 = vst [vmem:[#allocation2 + $0x10] sm:$0xf0] %v339
      %344 = vst [vmem:[#allocation2 + $0x18] sm:$0xf0] %v340
      %345 = vst [vmem:[#allocation1] ss:$2 sm:$0xff] %v252
      %v346 = vld.sshfl [vmem:[#allocation1] sm:$0xff pattern:$0x75316420]
      %v347 = vld.sshfl [vmem:[#allocation1 + $0x8] sm:$0xff pattern:$0x75316420]
      %350 = vst [vmem:[#allocation2 + $0x20] sm:$0xf] %v346
      %351 = vst [vmem:[#allocation2 + $0x28] sm:$0xf] %v347
      %352 = vst [vmem:[#allocation1] ss:$2 sm:$0xff] %v252
      %v353 = vld.sshfl [vmem:[#allocation1] sm:$0xff pattern:$0x75316420]
      %v354 = vld.sshfl [vmem:[#allocation1 + $0x8] sm:$0xff pattern:$0x75316420]
      %357 = vrot.lane.b32.xlu0 %v353, 127
      %v358 = vpop.permute.xlu0 %357
      %359 = vrot.lane.b32.xlu0 %v354, 127
      %v360 = vpop.permute.xlu0 %359
      %vm361 = vcmp.lt.s32.totalorder %v269, 127
      %v362 = vsel %vm361, %v358, %v360
      %v363 = vsel %vm361, %v360, %v358
      %v364 = vperm.slane %v253, 5
      %v365 = vperm.slane %v254, 5
      %v366 = vmul.f32 %v362, %v364
      %v367 = vmul.f32 %v363, %v365
      %v370 = vrot.slane %v366, 4
      %v371 = vrot.slane %v367, 4
      %374 = vst [vmem:[#allocation2 + $0x20] sm:$0xf0] %v370
      %375 = vst [vmem:[#allocation2 + $0x28] sm:$0xf0] %v371
      %376 = vst [vmem:[#allocation1] ss:$2 sm:$0xff] %v252
      %v377 = vld.sshfl [vmem:[#allocation1] sm:$0xff pattern:$0x75316420]
      %v378 = vld.sshfl [vmem:[#allocation1 + $0x8] sm:$0xff pattern:$0x75316420]
      %381 = vrot.lane.b32.xlu0 %v377, 113
      %v382 = vpop.permute.xlu0 %381
      %383 = vrot.lane.b32.xlu0 %v378, 113
      %v384 = vpop.permute.xlu0 %383
      %vm385 = vcmp.lt.s32.totalorder %v269, 113
      %v386 = vsel %vm385, %v382, %v384
      %v387 = vsel %vm385, %v384, %v382
      %v388 = vperm.slane %v253, 6
      %v389 = vperm.slane %v254, 6
      %v390 = vmul.f32 %v386, %v388
      %v391 = vmul.f32 %v387, %v389
      %392 = vst [vmem:[#allocation2 + $0x30] sm:$0xf] %v390
      %393 = vst [vmem:[#allocation2 + $0x38] sm:$0xf] %v391
      %394 = vst [vmem:[#allocation1] ss:$2 sm:$0xff] %v252
      %v395 = vld.sshfl [vmem:[#allocation1] sm:$0xff pattern:$0x75316420]
      %v396 = vld.sshfl [vmem:[#allocation1 + $0x8] sm:$0xff pattern:$0x75316420]
      %399 = vrot.lane.b32.xlu0 %v395, 112
      %v400 = vpop.permute.xlu0 %399
      %401 = vrot.lane.b32.xlu0 %v396, 112
      %v402 = vpop.permute.xlu0 %401
      %vm403 = vcmp.lt.s32.totalorder %v269, 112
      %v404 = vsel %vm403, %v400, %v402
      %v405 = vsel %vm403, %v402, %v400
      %v406 = vperm.slane %v253, 7
      %v407 = vperm.slane %v254, 7
      %v408 = vmul.f32 %v404, %v406
      %v409 = vmul.f32 %v405, %v407
      %v412 = vrot.slane %v408, 4
      %v413 = vrot.slane %v409, 4
      %416 = vst [vmem:[#allocation2 + $0x30] sm:$0xf0] %v412
      %417 = vst [vmem:[#allocation2 + $0x38] sm:$0xf0] %v413
      %418 = vst [vmem:[#allocation1] ss:$2 sm:$0xff] %v252
      %v419 = vld.sshfl [vmem:[#allocation1] sm:$0xff pattern:$0x75316420]
      %v420 = vld.sshfl [vmem:[#allocation1 + $0x8] sm:$0xff pattern:$0x75316420]
      %423 = vrot.lane.b32.xlu0 %v419, 111
      %v424 = vpop.permute.xlu0 %423
      %425 = vrot.lane.b32.xlu0 %v420, 111
      %v426 = vpop.permute.xlu0 %425
      %vm427 = vcmp.lt.s32.totalorder %v269, 111
      %v428 = vsel %vm427, %v424, %v426
      %v429 = vsel %vm427, %v426, %v424
      %v430 = vperm.slane %v255, 0
      %v431 = vperm.slane %v256, 0
      %v432 = vmul.f32 %v428, %v430
      %v433 = vmul.f32 %v429, %v431
      %434 = vst [vmem:[#allocation2 + $0x40] sm:$0xf] %v432
      %435 = vst [vmem:[#allocation2 + $0x48] sm:$0xf] %v433
      %v436 = vld [vmem:[%s2] sm:$0xff]
      %v437 = vld [vmem:[#allocation2] sm:$0xff]
      %v438 = vld [vmem:[#allocation2 + $0x8] sm:$0xff]
      %v439 = vld [vmem:[#allocation2 + $0x10] sm:$0xff]
      %v440 = vld [vmem:[#allocation2 + $0x18] sm:$0xff]
      %v441 = vld [vmem:[#allocation2 + $0x20] sm:$0xff]
      %v442 = vld [vmem:[#allocation2 + $0x28] sm:$0xff]
      %v443 = vld [vmem:[#allocation2 + $0x30] sm:$0xff]
      %v444 = vld [vmem:[#allocation2 + $0x38] sm:$0xff]
      %v445 = vld [vmem:[#allocation2 + $0x40] sm:$0xf]
      %v446 = vld [vmem:[#allocation2 + $0x48] sm:$0xf]
      %vm447 = vcmask 293888
      %v449 = vsel %vm447, %v436, 0
      %vm451 = vcmask 1043456
      %v453 = vsel %vm451, %v445, 0
      %v456 = vsel %vm451, %v446, 0
      %458 = vmatpush.msra.mxu0 0.0
      %459 = vmatpush.msra.mxu0 0.0
      %460 = vmatpush.msra.mxu0 0.0
      %461 = vmatpush.msra.mxu0 0.0
      %462 = vmatpush.msra.mxu0 0.0
      %463 = vmatpush.msra.mxu0 0.0
      %464 = vmatpush.msra.mxu0 0.0
      %465 = vmatpush.msra.mxu0 0.0
      %466 = vmatpush.msra.mxu0 0.0
      %467 = vmatpush.msra.mxu0 0.0
      %468 = vmatpush.msra.mxu0 0.0
      %469 = vmatpush.msra.mxu0 %v453
      %470 = vmatpush.msra.mxu0 %v443
      %471 = vmatpush.msra.mxu0 %v441
      %472 = vmatpush.msra.mxu0 %v439
      %473 = vmatpush.msra.mxu0 %v437
      %474 = vmatmul.f32.gmra.mxu0 %v449
      %v475 = vpop.f32.mrf.mxu0
      %v476 = vadd.f32 0.0, %v475
      %477 = vdwg.mxu0
      %478 = vmatpush.msra.mxu0 0.0
      %479 = vmatpush.msra.mxu0 0.0
      %480 = vmatpush.msra.mxu0 0.0
      %481 = vmatpush.msra.mxu0 0.0
      %482 = vmatpush.msra.mxu0 0.0
      %483 = vmatpush.msra.mxu0 0.0
      %484 = vmatpush.msra.mxu0 0.0
      %485 = vmatpush.msra.mxu0 0.0
      %486 = vmatpush.msra.mxu0 0.0
      %487 = vmatpush.msra.mxu0 0.0
      %488 = vmatpush.msra.mxu0 0.0
      %489 = vmatpush.msra.mxu0 %v456
      %490 = vmatpush.msra.mxu0 %v444
      %491 = vmatpush.msra.mxu0 %v442
      %492 = vmatpush.msra.mxu0 %v440
      %493 = vmatpush.msra.mxu0 %v438
      %494 = vmatmul.f32.gmra.mxu0 %v449
      %v495 = vpop.f32.mrf.mxu0
      %v496 = vadd.f32 0.0, %v495
      %497 = vdwg.mxu0
      %499 = vset.pattern.permute.xlu0 0
      %500 = vperm.xlu0 %499, %v257
      %v501 = vpop.permute.xlu0 %500
      %v503 = vmul.f32 %v476, %v501
      %v504 = vmul.f32 %v496, %v501
      %505 = vset.pattern.permute.xlu0 1
      %506 = vperm.xlu0 %505, %v257
      %v507 = vpop.permute.xlu0 %506
      %v509 = vadd.f32 %v503, %v507
      %v510 = vadd.f32 %v504, %v507
      %v511 = vmax.f32 %v509, 0.0
      %v512 = vmax.f32 %v510, 0.0
      %513 = vrot.lane.b32.xlu0 %v511, 17
      %v514 = vpop.permute.xlu0 %513
      %515 = vrot.lane.b32.xlu0 %v512, 17
      %v516 = vpop.permute.xlu0 %515
      %v517 = vsel %vm270, %v514, %v516
      %v518 = vsel %vm270, %v516, %v514
      %v519 = vmul.f32 %v518, %v273
      %v520 = vmul.f32 %v517, %v274
      %521 = vst [vmem:[#allocation3] sm:$0xff] %v519
      %522 = vst [vmem:[#allocation3 + $0x8] sm:$0xff] %v520
      %523 = vrot.lane.b32.xlu0 %v511, 16
      %v524 = vpop.permute.xlu0 %523
      %525 = vrot.lane.b32.xlu0 %v512, 16
      %v526 = vpop.permute.xlu0 %525
      %v527 = vsel %vm288, %v524, %v526
      %v528 = vsel %vm288, %v526, %v524
      %v529 = vmul.f32 %v528, %v291
      %v530 = vmul.f32 %v527, %v292
      %531 = vst [vmem:[#allocation3 + $0x10] sm:$0xff] %v529
      %532 = vst [vmem:[#allocation3 + $0x18] sm:$0xff] %v530
      %533 = vrot.lane.b32.xlu0 %v511, 15
      %v534 = vpop.permute.xlu0 %533
      %535 = vrot.lane.b32.xlu0 %v512, 15
      %v536 = vpop.permute.xlu0 %535
      %v537 = vsel %vm312, %v534, %v536
      %v538 = vsel %vm312, %v536, %v534
      %v539 = vmul.f32 %v538, %v315
      %v540 = vmul.f32 %v537, %v316
      %541 = vst [vmem:[#allocation3 + $0x20] sm:$0xff] %v539
      %542 = vst [vmem:[#allocation3 + $0x28] sm:$0xff] %v540
      %543 = vrot.lane.b32.xlu0 %v511, 1
      %v544 = vpop.permute.xlu0 %543
      %545 = vrot.lane.b32.xlu0 %v512, 1
      %v546 = vpop.permute.xlu0 %545
      %v547 = vsel %vm330, %v544, %v546
      %v548 = vsel %vm330, %v546, %v544
      %v549 = vmul.f32 %v548, %v333
      %v550 = vmul.f32 %v547, %v334
      %551 = vst [vmem:[#allocation3 + $0x30] sm:$0xff] %v549
      %552 = vst [vmem:[#allocation3 + $0x38] sm:$0xff] %v550
      %553 = vst [vmem:[#allocation3 + $0x40] sm:$0xff] %v511
      %554 = vst [vmem:[#allocation3 + $0x48] sm:$0xff] %v512
      %555 = vrot.lane.b32.xlu0 %v511, 127
      %v556 = vpop.permute.xlu0 %555
      %557 = vrot.lane.b32.xlu0 %v512, 127
      %v558 = vpop.permute.xlu0 %557
      %v559 = vsel %vm361, %v556, %v558
      %v560 = vsel %vm361, %v558, %v556
      %v561 = vmul.f32 %v559, %v364
      %v562 = vmul.f32 %v560, %v365
      %563 = vst [vmem:[#allocation3 + $0x50] sm:$0xff] %v561
      %564 = vst [vmem:[#allocation3 + $0x58] sm:$0xff] %v562
      %565 = vrot.lane.b32.xlu0 %v511, 113
      %v566 = vpop.permute.xlu0 %565
      %567 = vrot.lane.b32.xlu0 %v512, 113
      %v568 = vpop.permute.xlu0 %567
      %v569 = vsel %vm385, %v566, %v568
      %v570 = vsel %vm385, %v568, %v566
      %v571 = vmul.f32 %v569, %v388
      %v572 = vmul.f32 %v570, %v389
      %573 = vst [vmem:[#allocation3 + $0x60] sm:$0xff] %v571
      %574 = vst [vmem:[#allocation3 + $0x68] sm:$0xff] %v572
      %575 = vrot.lane.b32.xlu0 %v511, 112
      %v576 = vpop.permute.xlu0 %575
      %577 = vrot.lane.b32.xlu0 %v512, 112
      %v578 = vpop.permute.xlu0 %577
      %v579 = vsel %vm403, %v576, %v578
      %v580 = vsel %vm403, %v578, %v576
      %v581 = vmul.f32 %v579, %v406
      %v582 = vmul.f32 %v580, %v407
      %583 = vst [vmem:[#allocation3 + $0x70] sm:$0xff] %v581
      %584 = vst [vmem:[#allocation3 + $0x78] sm:$0xff] %v582
      %585 = vrot.lane.b32.xlu0 %v511, 111
      %v586 = vpop.permute.xlu0 %585
      %587 = vrot.lane.b32.xlu0 %v512, 111
      %v588 = vpop.permute.xlu0 %587
      %v589 = vsel %vm427, %v586, %v588
      %v590 = vsel %vm427, %v588, %v586
      %v591 = vmul.f32 %v589, %v430
      %v592 = vmul.f32 %v590, %v431
      %593 = vst [vmem:[#allocation3 + $0x80] sm:$0xff] %v591
      %594 = vst [vmem:[#allocation3 + $0x88] sm:$0xff] %v592
      %v595 = vld [vmem:[%s3] sm:$0xff]
      %v596 = vld [vmem:[#allocation3] sm:$0xff]
      %v597 = vld [vmem:[#allocation3 + $0x8] sm:$0xff]
      %v598 = vld [vmem:[#allocation3 + $0x10] sm:$0xff]
      %v599 = vld [vmem:[#allocation3 + $0x18] sm:$0xff]
      %v600 = vld [vmem:[#allocation3 + $0x20] sm:$0xff]
      %v601 = vld [vmem:[#allocation3 + $0x28] sm:$0xff]
      %v602 = vld [vmem:[#allocation3 + $0x30] sm:$0xff]
      %v603 = vld [vmem:[#allocation3 + $0x38] sm:$0xff]
      %v604 = vld [vmem:[#allocation3 + $0x40] sm:$0xff]
      %v605 = vld [vmem:[#allocation3 + $0x48] sm:$0xff]
      %v606 = vld [vmem:[#allocation3 + $0x50] sm:$0xff]
      %v607 = vld [vmem:[#allocation3 + $0x58] sm:$0xff]
      %v608 = vld [vmem:[#allocation3 + $0x60] sm:$0xff]
      %v609 = vld [vmem:[#allocation3 + $0x68] sm:$0xff]
      %v610 = vld [vmem:[#allocation3 + $0x70] sm:$0xff]
      %v611 = vld [vmem:[#allocation3 + $0x78] sm:$0xff]
      %v612 = vld [vmem:[#allocation3 + $0x80] sm:$0xff]
      %v613 = vld [vmem:[#allocation3 + $0x88] sm:$0xff]
      %vm614 = vcmask 588800
      %v616 = vsel %vm614, %v595, 0
      %618 = vmatpush.msra.mxu0 0.0
      %619 = vmatpush.msra.mxu0 0.0
      %620 = vmatpush.msra.mxu0 0.0
      %621 = vmatpush.msra.mxu0 0.0
      %622 = vmatpush.msra.mxu0 0.0
      %623 = vmatpush.msra.mxu0 0.0
      %624 = vmatpush.msra.mxu0 0.0
      %625 = vmatpush.msra.mxu0 %v612
      %626 = vmatpush.msra.mxu0 %v610
      %627 = vmatpush.msra.mxu0 %v608
      %628 = vmatpush.msra.mxu0 %v606
      %629 = vmatpush.msra.mxu0 %v604
      %630 = vmatpush.msra.mxu0 %v602
      %631 = vmatpush.msra.mxu0 %v600
      %632 = vmatpush.msra.mxu0 %v598
      %633 = vmatpush.msra.mxu0 %v596
      %634 = vmatmul.f32.gmra.mxu0 %v616
      %v635 = vpop.f32.mrf.mxu0
      %v636 = vadd.f32 0.0, %v635
      %637 = vdwg.mxu0
      %638 = vmatpush.msra.mxu0 0.0
      %639 = vmatpush.msra.mxu0 0.0
      %640 = vmatpush.msra.mxu0 0.0
      %641 = vmatpush.msra.mxu0 0.0
      %642 = vmatpush.msra.mxu0 0.0
      %643 = vmatpush.msra.mxu0 0.0
      %644 = vmatpush.msra.mxu0 0.0
      %645 = vmatpush.msra.mxu0 %v613
      %646 = vmatpush.msra.mxu0 %v611
      %647 = vmatpush.msra.mxu0 %v609
      %648 = vmatpush.msra.mxu0 %v607
      %649 = vmatpush.msra.mxu0 %v605
      %650 = vmatpush.msra.mxu0 %v603
      %651 = vmatpush.msra.mxu0 %v601
      %652 = vmatpush.msra.mxu0 %v599
      %653 = vmatpush.msra.mxu0 %v597
      %654 = vmatmul.f32.gmra.mxu0 %v616
      %v655 = vpop.f32.mrf.mxu0
      %v656 = vadd.f32 0.0, %v655
      %657 = vdwg.mxu0
      %658 = vset.pattern.permute.xlu0 2
      %659 = vperm.xlu0 %658, %v257
      %v660 = vpop.permute.xlu0 %659
      %v662 = vmul.f32 %v636, %v660
      %v663 = vmul.f32 %v656, %v660
      %664 = vset.pattern.permute.xlu0 3
      %665 = vperm.xlu0 %664, %v257
      %v666 = vpop.permute.xlu0 %665
      %v668 = vadd.f32 %v662, %v666
      %v669 = vadd.f32 %v663, %v666
      %v670 = vld [vmem:[%s4] sm:$0xff]
      %671 = vst [vmem:[#allocation1] ss:$2 sm:$0xff] %v252
      %v672 = vld.sshfl [vmem:[#allocation1] sm:$0xff pattern:$0x75316420]
      %v673 = vld.sshfl [vmem:[#allocation1 + $0x8] sm:$0xff pattern:$0x75316420]
      %vm674 = vcmask 31744
      %v676 = vsel %vm674, %v670, 0
      %v678 = vsel %vm451, %v672, 0
      %v680 = vsel %vm451, %v673, 0
      %682 = vmatpush.msra.mxu0 0.0
      %683 = vmatpush.msra.mxu0 0.0
      %684 = vmatpush.msra.mxu0 0.0
      %685 = vmatpush.msra.mxu0 0.0
      %686 = vmatpush.msra.mxu0 0.0
      %687 = vmatpush.msra.mxu0 0.0
      %688 = vmatpush.msra.mxu0 0.0
      %689 = vmatpush.msra.mxu0 0.0
      %690 = vmatpush.msra.mxu0 0.0
      %691 = vmatpush.msra.mxu0 0.0
      %692 = vmatpush.msra.mxu0 0.0
      %693 = vmatpush.msra.mxu0 0.0
      %694 = vmatpush.msra.mxu0 0.0
      %695 = vmatpush.msra.mxu0 0.0
      %696 = vmatpush.msra.mxu0 0.0
      %697 = vmatpush.msra.mxu0 %v678
      %698 = vmatmul.f32.gmra.mxu0 %v676
      %v699 = vpop.f32.mrf.mxu0
      %v700 = vadd.f32 0.0, %v699
      %701 = vdwg.mxu0
      %702 = vmatpush.msra.mxu0 0.0
      %703 = vmatpush.msra.mxu0 0.0
      %704 = vmatpush.msra.mxu0 0.0
      %705 = vmatpush.msra.mxu0 0.0
      %706 = vmatpush.msra.mxu0 0.0
      %707 = vmatpush.msra.mxu0 0.0
      %708 = vmatpush.msra.mxu0 0.0
      %709 = vmatpush.msra.mxu0 0.0
      %710 = vmatpush.msra.mxu0 0.0
      %711 = vmatpush.msra.mxu0 0.0
      %712 = vmatpush.msra.mxu0 0.0
      %713 = vmatpush.msra.mxu0 0.0
      %714 = vmatpush.msra.mxu0 0.0
      %715 = vmatpush.msra.mxu0 0.0
      %716 = vmatpush.msra.mxu0 0.0
      %717 = vmatpush.msra.mxu0 %v680
      %718 = vmatmul.f32.gmra.mxu0 %v676
      %v719 = vpop.f32.mrf.mxu0
      %v720 = vadd.f32 0.0, %v719
      %721 = vdwg.mxu0
      %722 = vset.pattern.permute.xlu0 4
      %723 = vperm.xlu0 %722, %v257
      %v724 = vpop.permute.xlu0 %723
      %v726 = vmul.f32 %v700, %v724
      %v727 = vmul.f32 %v720, %v724
      %728 = vset.pattern.permute.xlu0 5
      %729 = vperm.xlu0 %728, %v257
      %v730 = vpop.permute.xlu0 %729
      %v732 = vadd.f32 %v726, %v730
      %v733 = vadd.f32 %v727, %v730
      %v734 = vadd.f32 %v668, %v732
      %v735 = vadd.f32 %v669, %v733
      %v736 = vmax.f32 %v734, 0.0
      %v737 = vmax.f32 %v735, 0.0
      %738 = vst [vmem:[%s251] sm:$0xff] %v736
      %739 = vst [vmem:[%s251 + $0x8] sm:$0xff] %v737
      %p740 = scmp.lt.s32.totalorder %s17, 1
      %s741 = scalar_select %p740, %s17, 1
      %s742 = smul.addr %s741, 2
      %s743 = smul.addr %s742, 8
      %s744 = scalar_lea.vmem %s6, %s743
      // Predicated region
      $region45: #{basic_block_pallas.1} parent=43 // pred_check
        %p745 = pneg %p166
      $region46: #{basic_block_pallas.1} parent=43 // pred_check_branch
        %747 = sbr.rel (%p745) target = $region48
      $region47: #{basic_block_pallas.1} parent=43 // pred_region
        _
      $region48: #{basic_block_pallas.1} parent=43 // pred_fallthru
        _
    $region44: #{basic_block_pallas.1} parent=5 // pred_fallthru
      _
    %p748 = scmp.le.s32.totalorder 2, %s12
    // Predicated region
    $region49: #{basic_block_pallas.1} parent=5 // pred_check
      %p749 = pneg %p748
    $region50: #{basic_block_pallas.1} parent=5 // pred_check_branch
      %751 = sbr.rel (%p749) target = $region52
    $region51: #{basic_block_pallas.1} parent=5 // pred_region
      %s752 = ssub.s32 %s12, 2
      // Predicated region
      $region53: #{basic_block_pallas.1} parent=51 // pred_check
        %p753 = pneg %p172
      $region54: #{basic_block_pallas.1} parent=51 // pred_check_branch
        %755 = sbr.rel (%p753) target = $region56
      $region55: #{basic_block_pallas.1} parent=51 // pred_region
        %p756 = scmp.lt.s32.totalorder %s18, 1
        %s757 = scalar_select %p756, %s18, 1
        %s758 = smul.addr %s757, 2
        %s759 = smul.addr %s758, 8
        %s760 = scalar_lea.vmem %s6, %s759
      $region56: #{basic_block_pallas.1} parent=51 // pred_fallthru
        _
    $region52: #{basic_block_pallas.1} parent=5 // pred_fallthru
      _
  $region6: #{basic_block_pallas.1} parent=0 // loop_footer
    %s16 = sadd.s32 1, %s12
  $region7: #{basic_block_pallas.1} parent=0 // loop_footer_branch
    %11 = sbr.rel target = $region3
  $region8: #{basic_block_pallas.1} parent=0 // loop_exit
    _

</llo_original>
